<compile_context>
chip_gen: v7x
topology: tpu7x:2x2x1
jax: 0.10.0
libtpu: 0.0.40
codegen_flags: <defaults>
</compile_context>

<pallas_src>
import math
import functools

import jax
import jax.numpy as jnp
from jax import lax
from jax.experimental import pallas as pl
from jax.experimental.pallas import tpu as pltpu


_LOG_EPS = math.log(1e-08)


def _direction_loss(cos, mask_log, *, s, cos_m, sin_m, th, mm):
    # cos, mask_log: (TM, B) f32.  Returns the SUM over the TM rows of
    #   sum_j softmax(thetas)_j * (log_softmax(thetas)_j - mask_log_j)
    # with thetas = log(top / (top + sum_cos)) — softmax fused algebraically.
    sine = jnp.sqrt(jnp.maximum(1.0 - cos * cos, 0.0))   # clamp: |cos| can exceed 1 by a ulp
    phi = jnp.where(cos > th, cos * cos_m - sine * sin_m, cos - mm)

    cos_exp = jnp.exp(cos * s)                                       # (TM, B)
    sum_cos = jnp.sum(cos_exp, axis=1, keepdims=True) - cos_exp      # (TM, B)
    top = jnp.exp(phi * s)                                           # (TM, B)
    denom = top + sum_cos                                            # (TM, B)

    # Exact log path for thetas; approx reciprocal (single EUP vrcp) only for
    # the softmax weights.
    thetas = phi * s - jnp.log(denom)                                # (TM, B)
    ratio = top * pl.reciprocal(denom, approx=True)                  # exp(thetas)
    sum_ratio = jnp.sum(ratio, axis=1, keepdims=True)                # (TM, 1)

    # sum_j pred_j*(log_sm_j - mask_log_j)
    #   = dot(ratio, thetas - mask_log)/sum_ratio - log(sum_ratio)
    weighted = jnp.sum(ratio * (thetas - mask_log), axis=1, keepdims=True)
    row_loss = weighted / sum_ratio - jnp.log(sum_ratio)             # (TM, 1)
    return jnp.sum(row_loss)


def _arcface_kernel(img_row_ref, txt_row_ref, txt_t_ref, img_t_ref,
                    lrow_ref, lcol_ref, logm_ref, out_ref,
                    *, s, cos_m, sin_m, th, mm):
    # Labels mask for this row tile — exact integer compare.
    # NOTE: the equality mask is symmetric (labels==labels.T), so PyTorch's
    # row-norm broadcast (divide column j by ||mask[j,:]||) equals the
    # per-column count normalization precomputed in logm_ref; an asymmetric
    # mask would silently break this parity.
    eq = lrow_ref[...] == lcol_ref[...]                       # (TM, B)
    mask_log = jnp.where(eq, logm_ref[...], _LOG_EPS)         # (TM, B) f32

    # Pre-normalized, pre-transposed residents -> plain A @ B on the MXU.
    dn = (((1,), (0,)), ((), ()))
    cos_i2t = lax.dot_general(img_row_ref[...], txt_t_ref[...], dn,
                              preferred_element_type=jnp.float32)
    cos_t2i = lax.dot_general(txt_row_ref[...], img_t_ref[...], dn,
                              preferred_element_type=jnp.float32)

    kw = dict(s=s, cos_m=cos_m, sin_m=sin_m, th=th, mm=mm)
    partial = (_direction_loss(cos_i2t, mask_log, **kw)
               + _direction_loss(cos_t2i, mask_log, **kw))
    # Lane-dense (1, 8, 128) output tile (unmasked vst); wrapper reads [i,0,0].
    out_ref[...] = jnp.broadcast_to(partial, out_ref.shape).astype(out_ref.dtype)


def arcface_loss_pallas(input_img, input_text, labels, *, s=50.0, m=0.2,
                        row_tile=None, mxu_dtype=jnp.bfloat16):
    B, D = input_img.shape
    cos_m = math.cos(m)
    sin_m = math.sin(m)
    th = math.cos(math.pi - m)
    mm = math.sin(math.pi - m) * m
    eps = 1e-08

    # ---- hoisted preprocessing (one cheap XLA pass, done once) -------------
    def normalize(x):                               # == F.normalize(x, p=2, dim=1)
        x = x.astype(jnp.float32)
        n = jnp.sqrt(jnp.sum(x * x, axis=1, keepdims=True))
        return x / jnp.maximum(n, 1e-12)

    # Lane-dense feature dim: zero-pad D to a multiple of 128 AFTER
    # normalization (exact — padded zeros contribute nothing to dot products).
    d_pad = ((max(D, 1) + 127) // 128) * 128
    img_n = normalize(input_img)
    txt_n = normalize(input_text)
    if d_pad != D:
        pad = [(0, 0), (0, d_pad - D)]
        img_n = jnp.pad(img_n, pad)
        txt_n = jnp.pad(txt_n, pad)
    img_rows = img_n.astype(mxu_dtype)              # (B, Dp)  streamed LHS tiles
    txt_rows = txt_n.astype(mxu_dtype)              # (B, Dp)
    img_t = img_rows.T                              # (Dp, B)  resident RHS
    txt_t = txt_rows.T                              # (Dp, B)  resident RHS

    labels_i = labels.astype(jnp.int32)
    lrow = labels_i.reshape(B, 1)
    lcol = labels_i.reshape(1, B)
    # Per-column mask normalization: count_j = #{i : labels[i] == labels[j]}
    #   -> log(1/sqrt(count_j) + eps).  Valid because the mask is symmetric.
    counts = jnp.sum((lrow == lcol).astype(jnp.float32), axis=0, keepdims=True)
    logm = jnp.log(1.0 / jnp.sqrt(counts) + eps).astype(jnp.float32)   # (1, B)

    # ---- tiling / VMEM budget ----------------------------------------------
    if row_tile is None:
        row_tile = B if B <= 128 else 128
    assert B % row_tile == 0, "batch must be divisible by row_tile"
    num_tiles = B // row_tile

    itemsize = jnp.dtype(mxu_dtype).itemsize
    est_bytes = (2 * d_pad * B * itemsize * 2            # resident RHS (worst case 2 bufs)
                 + 2 * 2 * row_tile * d_pad * itemsize   # streamed LHS (double buffered)
                 + 16 * row_tile * max(B, 128) * 4       # live (TM, B) f32 temporaries
                 + (4 << 20))                            # labels / output / slack
    vmem_limit = int(max(32 << 20, min(est_bytes, 112 << 20)))

    kernel = functools.partial(_arcface_kernel, s=float(s), cos_m=cos_m,
                               sin_m=sin_m, th=th, mm=mm)

    def make_call(resident_mode):
        res_kw = {} if resident_mode is None else {"pipeline_mode": resident_mode}
        in_specs = [
            pl.BlockSpec((row_tile, d_pad), lambda i: (i, 0)),      # img row tile (LHS)
            pl.BlockSpec((row_tile, d_pad), lambda i: (i, 0)),      # txt row tile (LHS)
            pl.BlockSpec((d_pad, B), lambda i: (0, 0), **res_kw),   # txt^T resident RHS
            pl.BlockSpec((d_pad, B), lambda i: (0, 0), **res_kw),   # img^T resident RHS
            pl.BlockSpec((row_tile, 1), lambda i: (i, 0)),          # row labels (int32)
            pl.BlockSpec((1, B), lambda i: (0, 0), **res_kw),       # col labels (int32)
            pl.BlockSpec((1, B), lambda i: (0, 0), **res_kw),       # log(1/sqrt(count)+eps)
        ]
        return pl.pallas_call(
            kernel,
            out_shape=jax.ShapeDtypeStruct((num_tiles, 8, 128), jnp.float32),
            grid=(num_tiles,),
            in_specs=in_specs,
            out_specs=pl.BlockSpec((1, 8, 128), lambda i: (i, 0, 0)),
            compiler_params=pltpu.CompilerParams(
                dimension_semantics=("parallel",),
                vmem_limit_bytes=vmem_limit),
        )

    args = (img_rows, txt_rows, txt_t, img_t, lrow, lcol, logm)
    try:
        # Loop-invariant residents: single-buffer (halves their VMEM footprint).
        partials = make_call(pl.Buffered(1))(*args)
    except Exception:
        # Older jax without pipeline_mode support on pallas_call BlockSpecs.
        partials = make_call(None)(*args)

    # mean over batch of (i2t row loss) + mean over batch of (t2i row loss)
    return jnp.sum(partials[:, 0, 0]) / B


def arcface_loss_ref(input_img, input_text, labels, *, s=50.0, m=0.2,
                     matmul_dtype=jnp.float32):
    # Plain-JAX mirror of the PyTorch forward for verification.  matmul_dtype
    # lets us validate the bf16-MXU kernel against identical cosines.
    cos_m = math.cos(m); sin_m = math.sin(m)
    th = math.cos(math.pi - m); mm = math.sin(math.pi - m) * m
    eps = 1e-08
    B = input_img.shape[0]

    lab = labels.reshape(B, 1)
    mask = ((lab - lab.T) == 0).astype(jnp.float32)
    mask_norm = mask / jnp.linalg.norm(mask, axis=1)   # broadcasts over last dim (as torch)
    mask_log = jnp.log(mask_norm + eps)

    def normalize(x):
        n = jnp.linalg.norm(x, axis=1, keepdims=True)
        return x / jnp.maximum(n, 1e-12)

    def direction(a, b):
        an = normalize(a).astype(matmul_dtype)
        bn = normalize(b).astype(matmul_dtype)
        cos = jnp.dot(an, bn.T, preferred_element_type=jnp.float32)
        sine = jnp.sqrt(1.0 - cos * cos)
        phi = jnp.where(cos > th, cos * cos_m - sine * sin_m, cos - mm)
        ce = jnp.exp(cos * s)
        sum_cos = jnp.sum(ce, axis=1, keepdims=True) - ce
        top = jnp.exp(phi * s)
        thetas = jnp.log(top / (top + sum_cos))
        pred = jax.nn.softmax(thetas, axis=1)
        loss = pred * (jax.nn.log_softmax(thetas, axis=1) - mask_log)
        return jnp.mean(jnp.sum(loss, axis=1))

    return direction(input_img, input_text) + direction(input_text, input_img)


if __name__ == "__main__":
    key = jax.random.PRNGKey(0)
    k1, k2, k3 = jax.random.split(key, 3)
    B, D = 8, 32
    input_img = jax.random.normal(k1, (B, D), dtype=jnp.float32)
    input_text = jax.random.normal(k2, (B, D), dtype=jnp.float32)
    labels = jax.random.randint(k3, (B,), 0, 4, dtype=jnp.int32)

    # Full-precision MXU path vs exact reference (tight tolerance).
    out_f32 = jax.block_until_ready(
        arcface_loss_pallas(input_img, input_text, labels, mxu_dtype=jnp.float32))
    ref_f32 = arcface_loss_ref(input_img, input_text, labels)
    assert jnp.isfinite(out_f32), "f32 kernel output not finite"
    assert jnp.allclose(out_f32, ref_f32, rtol=5e-3, atol=1e-3), (out_f32, ref_f32)

    # Default bf16-MXU path vs a reference using the same bf16 cosines
    # (validates the fused-softmax algebra at the production precision).
    out_bf16 = jax.block_until_ready(
        arcface_loss_pallas(input_img, input_text, labels))
    ref_bf16 = arcface_loss_ref(input_img, input_text, labels,
                                matmul_dtype=jnp.bfloat16)
    assert jnp.isfinite(out_bf16), "bf16 kernel output not finite"
    assert jnp.allclose(out_bf16, ref_bf16, rtol=1e-2, atol=2e-3), (out_bf16, ref_bf16)

    print("KERNEL_OK")
</pallas_src>

<mosaic_0001>
module attributes {stable_mosaic.version = 11 : i64} {
  func.func @_arcface_kernel(%arg0: i32, %arg1: memref<8x128xf32, #tpu.memory_space<vmem>>, %arg2: memref<8x128xf32, #tpu.memory_space<vmem>>, %arg3: memref<128x8xf32, #tpu.memory_space<vmem>>, %arg4: memref<128x8xf32, #tpu.memory_space<vmem>>, %arg5: memref<8x1xi32, #tpu.memory_space<vmem>>, %arg6: memref<1x8xi32, #tpu.memory_space<vmem>>, %arg7: memref<1x8xf32, #tpu.memory_space<vmem>>, %arg8: memref<1x8x128xf32, #tpu.memory_space<vmem>>) attributes {dimension_semantics = [#tpu.dimension_semantics<parallel>], iteration_bounds = array<i64: 1>, scalar_prefetch = 0 : i64, scratch_operands = 0 : i64, tpu.core_type = #tpu.core_type<tc>, window_params = [{transform_indices = @transform_0, window_bounds = array<i64: 8, 128>}, {transform_indices = @transform_1, window_bounds = array<i64: 8, 128>}, {pipeline_mode = #tpu.pipeline_mode<synchronous>, transform_indices = @transform_2, window_bounds = array<i64: 128, 8>}, {pipeline_mode = #tpu.pipeline_mode<synchronous>, transform_indices = @transform_3, window_bounds = array<i64: 128, 8>}, {transform_indices = @transform_4, window_bounds = array<i64: 8, 1>}, {pipeline_mode = #tpu.pipeline_mode<synchronous>, transform_indices = @transform_5, window_bounds = array<i64: 1, 8>}, {pipeline_mode = #tpu.pipeline_mode<synchronous>, transform_indices = @transform_6, window_bounds = array<i64: 1, 8>}, {transform_indices = @transform_7, window_bounds = array<i64: 1, 8, 128>}]} {
    %c0 = arith.constant 0 : index
    %c0_0 = arith.constant 0 : index
    %0 = vector.load %arg5[%c0, %c0_0] : memref<8x1xi32, #tpu.memory_space<vmem>>, vector<8x1xi32>
    %c0_1 = arith.constant 0 : index
    %c0_2 = arith.constant 0 : index
    %1 = vector.load %arg6[%c0_1, %c0_2] : memref<1x8xi32, #tpu.memory_space<vmem>>, vector<1x8xi32>
    %2 = vector.broadcast %0 : vector<8x1xi32> to vector<8x8xi32>
    %3 = vector.broadcast %1 : vector<1x8xi32> to vector<8x8xi32>
    %4 = arith.cmpi eq, %2, %3 : vector<8x8xi32>
    %c0_3 = arith.constant 0 : index
    %c0_4 = arith.constant 0 : index
    %5 = vector.load %arg7[%c0_3, %c0_4] : memref<1x8xf32, #tpu.memory_space<vmem>>, vector<1x8xf32>
    %cst = arith.constant -18.420681 : f32
    %6 = vector.shape_cast %5 : vector<1x8xf32> to vector<1x8xf32>
    %7 = vector.broadcast %6 : vector<1x8xf32> to vector<8x8xf32>
    %8 = vector.broadcast %cst : f32 to vector<8x8xf32>
    %9 = arith.select %4, %7, %8 : vector<8x8xi1>, vector<8x8xf32>
    %c0_5 = arith.constant 0 : index
    %c0_6 = arith.constant 0 : index
    %10 = vector.load %arg1[%c0_5, %c0_6] : memref<8x128xf32, #tpu.memory_space<vmem>>, vector<8x128xf32>
    %c0_7 = arith.constant 0 : index
    %c0_8 = arith.constant 0 : index
    %11 = vector.load %arg3[%c0_7, %c0_8] : memref<128x8xf32, #tpu.memory_space<vmem>>, vector<128x8xf32>
    %cst_9 = arith.constant dense<0.000000e+00> : vector<8x8xf32>
    %12 = tpu.matmul %10, %11, %cst_9 {dimension_numbers = #tpu.dot_dimension_numbers<[1], [0], [0], [1], [0, 0, 1, 1], [], []>} : vector<8x128xf32>, vector<128x8xf32>, vector<8x8xf32> -> vector<8x8xf32>
    %c0_10 = arith.constant 0 : index
    %c0_11 = arith.constant 0 : index
    %13 = vector.load %arg2[%c0_10, %c0_11] : memref<8x128xf32, #tpu.memory_space<vmem>>, vector<8x128xf32>
    %c0_12 = arith.constant 0 : index
    %c0_13 = arith.constant 0 : index
    %14 = vector.load %arg4[%c0_12, %c0_13] : memref<128x8xf32, #tpu.memory_space<vmem>>, vector<128x8xf32>
    %cst_14 = arith.constant dense<0.000000e+00> : vector<8x8xf32>
    %15 = tpu.matmul %13, %14, %cst_14 {dimension_numbers = #tpu.dot_dimension_numbers<[1], [0], [0], [1], [0, 0, 1, 1], [], []>} : vector<8x128xf32>, vector<128x8xf32>, vector<8x8xf32> -> vector<8x8xf32>
    %16 = arith.mulf %12, %12 : vector<8x8xf32>
    %cst_15 = arith.constant 1.000000e+00 : f32
    %17 = vector.broadcast %cst_15 : f32 to vector<8x8xf32>
    %18 = arith.subf %17, %16 : vector<8x8xf32>
    %cst_16 = arith.constant 0.000000e+00 : f32
    %19 = vector.broadcast %cst_16 : f32 to vector<8x8xf32>
    %20 = arith.maximumf %18, %19 : vector<8x8xf32>
    %21 = math.sqrt %20 : vector<8x8xf32>
    %cst_17 = arith.constant -0.980066597 : f32
    %22 = vector.broadcast %cst_17 : f32 to vector<8x8xf32>
    %23 = arith.cmpf ogt, %12, %22 : vector<8x8xf32>
    %cst_18 = arith.constant 0.980066597 : f32
    %24 = vector.broadcast %cst_18 : f32 to vector<8x8xf32>
    %25 = arith.mulf %12, %24 : vector<8x8xf32>
    %cst_19 = arith.constant 0.198669329 : f32
    %26 = vector.broadcast %cst_19 : f32 to vector<8x8xf32>
    %27 = arith.mulf %21, %26 : vector<8x8xf32>
    %28 = arith.subf %25, %27 : vector<8x8xf32>
    %cst_20 = arith.constant 0.0397338644 : f32
    %29 = vector.broadcast %cst_20 : f32 to vector<8x8xf32>
    %30 = arith.subf %12, %29 : vector<8x8xf32>
    %31 = arith.select %23, %28, %30 : vector<8x8xi1>, vector<8x8xf32>
    %cst_21 = arith.constant 5.000000e+01 : f32
    %32 = vector.broadcast %cst_21 : f32 to vector<8x8xf32>
    %33 = arith.mulf %12, %32 : vector<8x8xf32>
    %34 = math.exp %33 : vector<8x8xf32>
    %cst_22 = arith.constant dense<0.000000e+00> : vector<8xf32>
    %35 = vector.multi_reduction <add>, %34, %cst_22 [1] : vector<8x8xf32> to vector<8xf32>
    %36 = vector.shape_cast %35 : vector<8xf32> to vector<8x1xf32>
    %37 = vector.broadcast %36 : vector<8x1xf32> to vector<8x8xf32>
    %38 = arith.subf %37, %34 : vector<8x8xf32>
    %cst_23 = arith.constant 5.000000e+01 : f32
    %39 = vector.broadcast %cst_23 : f32 to vector<8x8xf32>
    %40 = arith.mulf %31, %39 : vector<8x8xf32>
    %41 = math.exp %40 : vector<8x8xf32>
    %42 = arith.addf %41, %38 : vector<8x8xf32>
    %cst_24 = arith.constant 5.000000e+01 : f32
    %43 = vector.broadcast %cst_24 : f32 to vector<8x8xf32>
    %44 = arith.mulf %31, %43 : vector<8x8xf32>
    %45 = math.log %42 : vector<8x8xf32>
    %46 = arith.subf %44, %45 : vector<8x8xf32>
    %47 = tpu.reciprocal %42 {approx = true} : vector<8x8xf32> -> vector<8x8xf32>
    %48 = arith.mulf %41, %47 : vector<8x8xf32>
    %cst_25 = arith.constant dense<0.000000e+00> : vector<8xf32>
    %49 = vector.multi_reduction <add>, %48, %cst_25 [1] : vector<8x8xf32> to vector<8xf32>
    %50 = vector.shape_cast %49 : vector<8xf32> to vector<8x1xf32>
    %51 = arith.subf %46, %9 : vector<8x8xf32>
    %52 = arith.mulf %48, %51 : vector<8x8xf32>
    %cst_26 = arith.constant dense<0.000000e+00> : vector<8xf32>
    %53 = vector.multi_reduction <add>, %52, %cst_26 [1] : vector<8x8xf32> to vector<8xf32>
    %54 = vector.shape_cast %53 : vector<8xf32> to vector<8x1xf32>
    %55 = arith.divf %54, %50 : vector<8x1xf32>
    %56 = math.log %50 : vector<8x1xf32>
    %57 = arith.subf %55, %56 : vector<8x1xf32>
    %58 = vector.shape_cast %57 : vector<8x1xf32> to vector<1x8x1xf32>
    %cst_27 = arith.constant dense<0.000000e+00> : vector<1xf32>
    %59 = vector.multi_reduction <add>, %58, %cst_27 [1, 2] : vector<1x8x1xf32> to vector<1xf32>
    %60 = vector.shape_cast %59 : vector<1xf32> to vector<1x1x1xf32>
    %61 = vector.extract %60[0, 0, 0] : f32 from vector<1x1x1xf32>
    %62 = arith.mulf %15, %15 : vector<8x8xf32>
    %cst_28 = arith.constant 1.000000e+00 : f32
    %63 = vector.broadcast %cst_28 : f32 to vector<8x8xf32>
    %64 = arith.subf %63, %62 : vector<8x8xf32>
    %cst_29 = arith.constant 0.000000e+00 : f32
    %65 = vector.broadcast %cst_29 : f32 to vector<8x8xf32>
    %66 = arith.maximumf %64, %65 : vector<8x8xf32>
    %67 = math.sqrt %66 : vector<8x8xf32>
    %cst_30 = arith.constant -0.980066597 : f32
    %68 = vector.broadcast %cst_30 : f32 to vector<8x8xf32>
    %69 = arith.cmpf ogt, %15, %68 : vector<8x8xf32>
    %cst_31 = arith.constant 0.980066597 : f32
    %70 = vector.broadcast %cst_31 : f32 to vector<8x8xf32>
    %71 = arith.mulf %15, %70 : vector<8x8xf32>
    %cst_32 = arith.constant 0.198669329 : f32
    %72 = vector.broadcast %cst_32 : f32 to vector<8x8xf32>
    %73 = arith.mulf %67, %72 : vector<8x8xf32>
    %74 = arith.subf %71, %73 : vector<8x8xf32>
    %cst_33 = arith.constant 0.0397338644 : f32
    %75 = vector.broadcast %cst_33 : f32 to vector<8x8xf32>
    %76 = arith.subf %15, %75 : vector<8x8xf32>
    %77 = arith.select %69, %74, %76 : vector<8x8xi1>, vector<8x8xf32>
    %cst_34 = arith.constant 5.000000e+01 : f32
    %78 = vector.broadcast %cst_34 : f32 to vector<8x8xf32>
    %79 = arith.mulf %15, %78 : vector<8x8xf32>
    %80 = math.exp %79 : vector<8x8xf32>
    %cst_35 = arith.constant dense<0.000000e+00> : vector<8xf32>
    %81 = vector.multi_reduction <add>, %80, %cst_35 [1] : vector<8x8xf32> to vector<8xf32>
    %82 = vector.shape_cast %81 : vector<8xf32> to vector<8x1xf32>
    %83 = vector.broadcast %82 : vector<8x1xf32> to vector<8x8xf32>
    %84 = arith.subf %83, %80 : vector<8x8xf32>
    %cst_36 = arith.constant 5.000000e+01 : f32
    %85 = vector.broadcast %cst_36 : f32 to vector<8x8xf32>
    %86 = arith.mulf %77, %85 : vector<8x8xf32>
    %87 = math.exp %86 : vector<8x8xf32>
    %88 = arith.addf %87, %84 : vector<8x8xf32>
    %cst_37 = arith.constant 5.000000e+01 : f32
    %89 = vector.broadcast %cst_37 : f32 to vector<8x8xf32>
    %90 = arith.mulf %77, %89 : vector<8x8xf32>
    %91 = math.log %88 : vector<8x8xf32>
    %92 = arith.subf %90, %91 : vector<8x8xf32>
    %93 = tpu.reciprocal %88 {approx = true} : vector<8x8xf32> -> vector<8x8xf32>
    %94 = arith.mulf %87, %93 : vector<8x8xf32>
    %cst_38 = arith.constant dense<0.000000e+00> : vector<8xf32>
    %95 = vector.multi_reduction <add>, %94, %cst_38 [1] : vector<8x8xf32> to vector<8xf32>
    %96 = vector.shape_cast %95 : vector<8xf32> to vector<8x1xf32>
    %97 = arith.subf %92, %9 : vector<8x8xf32>
    %98 = arith.mulf %94, %97 : vector<8x8xf32>
    %cst_39 = arith.constant dense<0.000000e+00> : vector<8xf32>
    %99 = vector.multi_reduction <add>, %98, %cst_39 [1] : vector<8x8xf32> to vector<8xf32>
    %100 = vector.shape_cast %99 : vector<8xf32> to vector<8x1xf32>
    %101 = arith.divf %100, %96 : vector<8x1xf32>
    %102 = math.log %96 : vector<8x1xf32>
    %103 = arith.subf %101, %102 : vector<8x1xf32>
    %104 = vector.shape_cast %103 : vector<8x1xf32> to vector<1x8x1xf32>
    %cst_40 = arith.constant dense<0.000000e+00> : vector<1xf32>
    %105 = vector.multi_reduction <add>, %104, %cst_40 [1, 2] : vector<1x8x1xf32> to vector<1xf32>
    %106 = vector.shape_cast %105 : vector<1xf32> to vector<1x1x1xf32>
    %107 = vector.extract %106[0, 0, 0] : f32 from vector<1x1x1xf32>
    %108 = arith.addf %61, %107 : f32
    %109 = vector.broadcast %108 : f32 to vector<1x8x128xf32>
    %c0_41 = arith.constant 0 : index
    %c0_42 = arith.constant 0 : index
    %c0_43 = arith.constant 0 : index
    %110 = vector.load %arg8[%c0_41, %c0_42, %c0_43] : memref<1x8x128xf32, #tpu.memory_space<vmem>>, vector<1x8x128xf32>
    tpu.vector_store %arg8[%c0_41, %c0_42, %c0_43], %109 {strides = array<i32>} : memref<1x8x128xf32, #tpu.memory_space<vmem>>, vector<1x8x128xf32>,
    return
  }
  func.func @transform_0(%arg0: i32) -> (i32, i32) {
    %c0_i32 = arith.constant 0 : i32
    %c0_i32_0 = arith.constant 0 : i32
    return %arg0, %c0_i32 : i32, i32
  }
  func.func @transform_1(%arg0: i32) -> (i32, i32) {
    %c0_i32 = arith.constant 0 : i32
    %c0_i32_0 = arith.constant 0 : i32
    return %arg0, %c0_i32 : i32, i32
  }
  func.func @transform_2(%arg0: i32) -> (i32, i32) {
    %c0_i32 = arith.constant 0 : i32
    %c0_i32_0 = arith.constant 0 : i32
    %c0_i32_1 = arith.constant 0 : i32
    return %c0_i32, %c0_i32_0 : i32, i32
  }
  func.func @transform_3(%arg0: i32) -> (i32, i32) {
    %c0_i32 = arith.constant 0 : i32
    %c0_i32_0 = arith.constant 0 : i32
    %c0_i32_1 = arith.constant 0 : i32
    return %c0_i32, %c0_i32_0 : i32, i32
  }
  func.func @transform_4(%arg0: i32) -> (i32, i32) {
    %c0_i32 = arith.constant 0 : i32
    %c0_i32_0 = arith.constant 0 : i32
    return %arg0, %c0_i32 : i32, i32
  }
  func.func @transform_5(%arg0: i32) -> (i32, i32) {
    %c0_i32 = arith.constant 0 : i32
    %c0_i32_0 = arith.constant 0 : i32
    %c0_i32_1 = arith.constant 0 : i32
    return %c0_i32, %c0_i32_0 : i32, i32
  }
  func.func @transform_6(%arg0: i32) -> (i32, i32) {
    %c0_i32 = arith.constant 0 : i32
    %c0_i32_0 = arith.constant 0 : i32
    %c0_i32_1 = arith.constant 0 : i32
    return %c0_i32, %c0_i32_0 : i32, i32
  }
  func.func @transform_7(%arg0: i32) -> (i32, i32, i32) {
    %c0_i32 = arith.constant 0 : i32
    %c0_i32_0 = arith.constant 0 : i32
    %c0_i32_1 = arith.constant 0 : i32
    return %arg0, %c0_i32, %c0_i32_0 : i32, i32, i32
  }
}

module attributes {stable_mosaic.version = 11 : i64} {
  func.func @_arcface_kernel(%arg0: i32, %arg1: memref<8x128xf32, #tpu.memory_space<vmem>>, %arg2: memref<8x128xf32, #tpu.memory_space<vmem>>, %arg3: memref<128x8xf32, #tpu.memory_space<vmem>>, %arg4: memref<128x8xf32, #tpu.memory_space<vmem>>, %arg5: memref<8x1xi32, #tpu.memory_space<vmem>>, %arg6: memref<1x8xi32, #tpu.memory_space<vmem>>, %arg7: memref<1x8xf32, #tpu.memory_space<vmem>>, %arg8: memref<1x8x128xf32, #tpu.memory_space<vmem>>) attributes {dimension_semantics = [#tpu.dimension_semantics<parallel>], iteration_bounds = array<i64: 1>, scalar_prefetch = 0 : i64, scratch_operands = 0 : i64, tpu.core_type = #tpu.core_type<tc>, window_params = [{transform_indices = @transform_0, window_bounds = array<i64: 8, 128>}, {transform_indices = @transform_1, window_bounds = array<i64: 8, 128>}, {pipeline_mode = #tpu.pipeline_mode<synchronous>, transform_indices = @transform_2, window_bounds = array<i64: 128, 8>}, {pipeline_mode = #tpu.pipeline_mode<synchronous>, transform_indices = @transform_3, window_bounds = array<i64: 128, 8>}, {transform_indices = @transform_4, window_bounds = array<i64: 8, 1>}, {pipeline_mode = #tpu.pipeline_mode<synchronous>, transform_indices = @transform_5, window_bounds = array<i64: 1, 8>}, {pipeline_mode = #tpu.pipeline_mode<synchronous>, transform_indices = @transform_6, window_bounds = array<i64: 1, 8>}, {transform_indices = @transform_7, window_bounds = array<i64: 1, 8, 128>}]} {
    %c0 = arith.constant 0 : index
    %c0_0 = arith.constant 0 : index
    %0 = vector.load %arg5[%c0, %c0_0] : memref<8x1xi32, #tpu.memory_space<vmem>>, vector<8x1xi32>
    %c0_1 = arith.constant 0 : index
    %c0_2 = arith.constant 0 : index
    %1 = vector.load %arg6[%c0_1, %c0_2] : memref<1x8xi32, #tpu.memory_space<vmem>>, vector<1x8xi32>
    %2 = vector.broadcast %0 : vector<8x1xi32> to vector<8x8xi32>
    %3 = vector.broadcast %1 : vector<1x8xi32> to vector<8x8xi32>
    %4 = arith.cmpi eq, %2, %3 : vector<8x8xi32>
    %c0_3 = arith.constant 0 : index
    %c0_4 = arith.constant 0 : index
    %5 = vector.load %arg7[%c0_3, %c0_4] : memref<1x8xf32, #tpu.memory_space<vmem>>, vector<1x8xf32>
    %cst = arith.constant -18.420681 : f32
    %6 = vector.shape_cast %5 : vector<1x8xf32> to vector<1x8xf32>
    %7 = vector.broadcast %6 : vector<1x8xf32> to vector<8x8xf32>
    %8 = vector.broadcast %cst : f32 to vector<8x8xf32>
    %9 = arith.select %4, %7, %8 : vector<8x8xi1>, vector<8x8xf32>
    %c0_5 = arith.constant 0 : index
    %c0_6 = arith.constant 0 : index
    %10 = vector.load %arg1[%c0_5, %c0_6] : memref<8x128xf32, #tpu.memory_space<vmem>>, vector<8x128xf32>
    %c0_7 = arith.constant 0 : index
    %c0_8 = arith.constant 0 : index
    %11 = vector.load %arg3[%c0_7, %c0_8] : memref<128x8xf32, #tpu.memory_space<vmem>>, vector<128x8xf32>
    %cst_9 = arith.constant dense<0.000000e+00> : vector<8x8xf32>
    %12 = tpu.matmul %10, %11, %cst_9 {dimension_numbers = #tpu.dot_dimension_numbers<[1], [0], [0], [1], [0, 0, 1, 1], [], []>} : vector<8x128xf32>, vector<128x8xf32>, vector<8x8xf32> -> vector<8x8xf32>
    %c0_10 = arith.constant 0 : index
    %c0_11 = arith.constant 0 : index
    %13 = vector.load %arg2[%c0_10, %c0_11] : memref<8x128xf32, #tpu.memory_space<vmem>>, vector<8x128xf32>
    %c0_12 = arith.constant 0 : index
    %c0_13 = arith.constant 0 : index
    %14 = vector.load %arg4[%c0_12, %c0_13] : memref<128x8xf32, #tpu.memory_space<vmem>>, vector<128x8xf32>
    %cst_14 = arith.constant dense<0.000000e+00> : vector<8x8xf32>
    %15 = tpu.matmul %13, %14, %cst_14 {dimension_numbers = #tpu.dot_dimension_numbers<[1], [0], [0], [1], [0, 0, 1, 1], [], []>} : vector<8x128xf32>, vector<128x8xf32>, vector<8x8xf32> -> vector<8x8xf32>
    %16 = arith.mulf %12, %12 : vector<8x8xf32>
    %cst_15 = arith.constant 1.000000e+00 : f32
    %17 = vector.broadcast %cst_15 : f32 to vector<8x8xf32>
    %18 = arith.subf %17, %16 : vector<8x8xf32>
    %cst_16 = arith.constant 0.000000e+00 : f32
    %19 = vector.broadcast %cst_16 : f32 to vector<8x8xf32>
    %20 = arith.maximumf %18, %19 : vector<8x8xf32>
    %21 = math.sqrt %20 : vector<8x8xf32>
    %cst_17 = arith.constant -0.980066597 : f32
    %22 = vector.broadcast %cst_17 : f32 to vector<8x8xf32>
    %23 = arith.cmpf ogt, %12, %22 : vector<8x8xf32>
    %cst_18 = arith.constant 0.980066597 : f32
    %24 = vector.broadcast %cst_18 : f32 to vector<8x8xf32>
    %25 = arith.mulf %12, %24 : vector<8x8xf32>
    %cst_19 = arith.constant 0.198669329 : f32
    %26 = vector.broadcast %cst_19 : f32 to vector<8x8xf32>
    %27 = arith.mulf %21, %26 : vector<8x8xf32>
    %28 = arith.subf %25, %27 : vector<8x8xf32>
    %cst_20 = arith.constant 0.0397338644 : f32
    %29 = vector.broadcast %cst_20 : f32 to vector<8x8xf32>
    %30 = arith.subf %12, %29 : vector<8x8xf32>
    %31 = arith.select %23, %28, %30 : vector<8x8xi1>, vector<8x8xf32>
    %cst_21 = arith.constant 5.000000e+01 : f32
    %32 = vector.broadcast %cst_21 : f32 to vector<8x8xf32>
    %33 = arith.mulf %12, %32 : vector<8x8xf32>
    %34 = math.exp %33 : vector<8x8xf32>
    %cst_22 = arith.constant dense<0.000000e+00> : vector<8xf32>
    %35 = vector.multi_reduction <add>, %34, %cst_22 [1] : vector<8x8xf32> to vector<8xf32>
    %36 = vector.shape_cast %35 : vector<8xf32> to vector<8x1xf32>
    %37 = vector.broadcast %36 : vector<8x1xf32> to vector<8x8xf32>
    %38 = arith.subf %37, %34 : vector<8x8xf32>
    %cst_23 = arith.constant 5.000000e+01 : f32
    %39 = vector.broadcast %cst_23 : f32 to vector<8x8xf32>
    %40 = arith.mulf %31, %39 : vector<8x8xf32>
    %41 = math.exp %40 : vector<8x8xf32>
    %42 = arith.addf %41, %38 : vector<8x8xf32>
    %cst_24 = arith.constant 5.000000e+01 : f32
    %43 = vector.broadcast %cst_24 : f32 to vector<8x8xf32>
    %44 = arith.mulf %31, %43 : vector<8x8xf32>
    %45 = math.log %42 : vector<8x8xf32>
    %46 = arith.subf %44, %45 : vector<8x8xf32>
    %47 = tpu.reciprocal %42 {approx = true} : vector<8x8xf32> -> vector<8x8xf32>
    %48 = arith.mulf %41, %47 : vector<8x8xf32>
    %cst_25 = arith.constant dense<0.000000e+00> : vector<8xf32>
    %49 = vector.multi_reduction <add>, %48, %cst_25 [1] : vector<8x8xf32> to vector<8xf32>
    %50 = vector.shape_cast %49 : vector<8xf32> to vector<8x1xf32>
    %51 = arith.subf %46, %9 : vector<8x8xf32>
    %52 = arith.mulf %48, %51 : vector<8x8xf32>
    %cst_26 = arith.constant dense<0.000000e+00> : vector<8xf32>
    %53 = vector.multi_reduction <add>, %52, %cst_26 [1] : vector<8x8xf32> to vector<8xf32>
    %54 = vector.shape_cast %53 : vector<8xf32> to vector<8x1xf32>
    %55 = arith.divf %54, %50 : vector<8x1xf32>
    %56 = math.log %50 : vector<8x1xf32>
    %57 = arith.subf %55, %56 : vector<8x1xf32>
    %58 = vector.shape_cast %57 : vector<8x1xf32> to vector<1x8x1xf32>
    %cst_27 = arith.constant dense<0.000000e+00> : vector<1xf32>
    %59 = vector.multi_reduction <add>, %58, %cst_27 [1, 2] : vector<1x8x1xf32> to vector<1xf32>
    %60 = vector.shape_cast %59 : vector<1xf32> to vector<1x1x1xf32>
    %61 = vector.extract %60[0, 0, 0] : f32 from vector<1x1x1xf32>
    %62 = arith.mulf %15, %15 : vector<8x8xf32>
    %cst_28 = arith.constant 1.000000e+00 : f32
    %63 = vector.broadcast %cst_28 : f32 to vector<8x8xf32>
    %64 = arith.subf %63, %62 : vector<8x8xf32>
    %cst_29 = arith.constant 0.000000e+00 : f32
    %65 = vector.broadcast %cst_29 : f32 to vector<8x8xf32>
    %66 = arith.maximumf %64, %65 : vector<8x8xf32>
    %67 = math.sqrt %66 : vector<8x8xf32>
    %cst_30 = arith.constant -0.980066597 : f32
    %68 = vector.broadcast %cst_30 : f32 to vector<8x8xf32>
    %69 = arith.cmpf ogt, %15, %68 : vector<8x8xf32>
    %cst_31 = arith.constant 0.980066597 : f32
    %70 = vector.broadcast %cst_31 : f32 to vector<8x8xf32>
    %71 = arith.mulf %15, %70 : vector<8x8xf32>
    %cst_32 = arith.constant 0.198669329 : f32
    %72 = vector.broadcast %cst_32 : f32 to vector<8x8xf32>
    %73 = arith.mulf %67, %72 : vector<8x8xf32>
    %74 = arith.subf %71, %73 : vector<8x8xf32>
    %cst_33 = arith.constant 0.0397338644 : f32
    %75 = vector.broadcast %cst_33 : f32 to vector<8x8xf32>
    %76 = arith.subf %15, %75 : vector<8x8xf32>
    %77 = arith.select %69, %74, %76 : vector<8x8xi1>, vector<8x8xf32>
    %cst_34 = arith.constant 5.000000e+01 : f32
    %78 = vector.broadcast %cst_34 : f32 to vector<8x8xf32>
    %79 = arith.mulf %15, %78 : vector<8x8xf32>
    %80 = math.exp %79 : vector<8x8xf32>
    %cst_35 = arith.constant dense<0.000000e+00> : vector<8xf32>
    %81 = vector.multi_reduction <add>, %80, %cst_35 [1] : vector<8x8xf32> to vector<8xf32>
    %82 = vector.shape_cast %81 : vector<8xf32> to vector<8x1xf32>
    %83 = vector.broadcast %82 : vector<8x1xf32> to vector<8x8xf32>
    %84 = arith.subf %83, %80 : vector<8x8xf32>
    %cst_36 = arith.constant 5.000000e+01 : f32
    %85 = vector.broadcast %cst_36 : f32 to vector<8x8xf32>
    %86 = arith.mulf %77, %85 : vector<8x8xf32>
    %87 = math.exp %86 : vector<8x8xf32>
    %88 = arith.addf %87, %84 : vector<8x8xf32>
    %cst_37 = arith.constant 5.000000e+01 : f32
    %89 = vector.broadcast %cst_37 : f32 to vector<8x8xf32>
    %90 = arith.mulf %77, %89 : vector<8x8xf32>
    %91 = math.log %88 : vector<8x8xf32>
    %92 = arith.subf %90, %91 : vector<8x8xf32>
    %93 = tpu.reciprocal %88 {approx = true} : vector<8x8xf32> -> vector<8x8xf32>
    %94 = arith.mulf %87, %93 : vector<8x8xf32>
    %cst_38 = arith.constant dense<0.000000e+00> : vector<8xf32>
    %95 = vector.multi_reduction <add>, %94, %cst_38 [1] : vector<8x8xf32> to vector<8xf32>
    %96 = vector.shape_cast %95 : vector<8xf32> to vector<8x1xf32>
    %97 = arith.subf %92, %9 : vector<8x8xf32>
    %98 = arith.mulf %94, %97 : vector<8x8xf32>
    %cst_39 = arith.constant dense<0.000000e+00> : vector<8xf32>
    %99 = vector.multi_reduction <add>, %98, %cst_39 [1] : vector<8x8xf32> to vector<8xf32>
    %100 = vector.shape_cast %99 : vector<8xf32> to vector<8x1xf32>
    %101 = arith.divf %100, %96 : vector<8x1xf32>
    %102 = math.log %96 : vector<8x1xf32>
    %103 = arith.subf %101, %102 : vector<8x1xf32>
    %104 = vector.shape_cast %103 : vector<8x1xf32> to vector<1x8x1xf32>
    %cst_40 = arith.constant dense<0.000000e+00> : vector<1xf32>
    %105 = vector.multi_reduction <add>, %104, %cst_40 [1, 2] : vector<1x8x1xf32> to vector<1xf32>
    %106 = vector.shape_cast %105 : vector<1xf32> to vector<1x1x1xf32>
    %107 = vector.extract %106[0, 0, 0] : f32 from vector<1x1x1xf32>
    %108 = arith.addf %61, %107 : f32
    %109 = vector.broadcast %108 : f32 to vector<1x8x128xf32>
    %c0_41 = arith.constant 0 : index
    %c0_42 = arith.constant 0 : index
    %c0_43 = arith.constant 0 : index
    %110 = vector.load %arg8[%c0_41, %c0_42, %c0_43] : memref<1x8x128xf32, #tpu.memory_space<vmem>>, vector<1x8x128xf32>
    tpu.vector_store %arg8[%c0_41, %c0_42, %c0_43], %109 {strides = array<i32>} : memref<1x8x128xf32, #tpu.memory_space<vmem>>, vector<1x8x128xf32>,
    return
  }
  func.func @transform_0(%arg0: i32) -> (i32, i32) {
    %c0_i32 = arith.constant 0 : i32
    %c0_i32_0 = arith.constant 0 : i32
    return %arg0, %c0_i32 : i32, i32
  }
  func.func @transform_1(%arg0: i32) -> (i32, i32) {
    %c0_i32 = arith.constant 0 : i32
    %c0_i32_0 = arith.constant 0 : i32
    return %arg0, %c0_i32 : i32, i32
  }
  func.func @transform_2(%arg0: i32) -> (i32, i32) {
    %c0_i32 = arith.constant 0 : i32
    %c0_i32_0 = arith.constant 0 : i32
    %c0_i32_1 = arith.constant 0 : i32
    return %c0_i32, %c0_i32_0 : i32, i32
  }
  func.func @transform_3(%arg0: i32) -> (i32, i32) {
    %c0_i32 = arith.constant 0 : i32
    %c0_i32_0 = arith.constant 0 : i32
    %c0_i32_1 = arith.constant 0 : i32
    return %c0_i32, %c0_i32_0 : i32, i32
  }
  func.func @transform_4(%arg0: i32) -> (i32, i32) {
    %c0_i32 = arith.constant 0 : i32
    %c0_i32_0 = arith.constant 0 : i32
    return %arg0, %c0_i32 : i32, i32
  }
  func.func @transform_5(%arg0: i32) -> (i32, i32) {
    %c0_i32 = arith.constant 0 : i32
    %c0_i32_0 = arith.constant 0 : i32
    %c0_i32_1 = arith.constant 0 : i32
    return %c0_i32, %c0_i32_0 : i32, i32
  }
  func.func @transform_6(%arg0: i32) -> (i32, i32) {
    %c0_i32 = arith.constant 0 : i32
    %c0_i32_0 = arith.constant 0 : i32
    %c0_i32_1 = arith.constant 0 : i32
    return %c0_i32, %c0_i32_0 : i32, i32
  }
  func.func @transform_7(%arg0: i32) -> (i32, i32, i32) {
    %c0_i32 = arith.constant 0 : i32
    %c0_i32_0 = arith.constant 0 : i32
    %c0_i32_1 = arith.constant 0 : i32
    return %arg0, %c0_i32, %c0_i32_0 : i32, i32, i32
  }
}

</mosaic_0001>

<llo_original>
// kernel: tpu_custom_call.1
$region0: #{tpu_custom_call.1}
  #allocation0 [shape = 'u32[]', space=smem, size = 0x4, offset = 0x4, fixed_abs, tag = 'smem constant byte address 0x4 - core index']
  #allocation1 [shape = 'u32[144,128]{1,0:T(1,128)}', space=vmem, size = 0x12000, scoped, tag = 'internal scratch']
  %s0 = inlined_call_operand.vmem [shape: f32[8,128], index: 0, kind: input, shape index: {}]
  %s1 = inlined_call_operand.vmem [shape: f32[8,128], index: 1, kind: input, shape index: {}]
  %s2 = inlined_call_operand.vmem [shape: f32[128,8], index: 2, kind: input, shape index: {}]
  %s3 = inlined_call_operand.vmem [shape: f32[128,8], index: 3, kind: input, shape index: {}]
  %s4 = inlined_call_operand.vmem [shape: s32[8,1], index: 4, kind: input, shape index: {}]
  %s5 = inlined_call_operand.vmem [shape: s32[1,8], index: 5, kind: input, shape index: {}]
  %s6 = inlined_call_operand.vmem [shape: f32[1,8], index: 6, kind: input, shape index: {}]
  %s7 = inlined_call_operand.hbm [shape: f32[1,8,128], index: 7, kind: output, shape index: {}]
  %s8 = sld [smem:[#allocation0]]
  $region38: #{tpu_custom_call.1} parent=0
    _
  %s10 = ssub.s32 1, %s8
  %s11 = scalar_select 0, %s10, %s8
  $region1: #{tpu_custom_call.1} parent=0
    #allocation2 [shape = 'u8[4096]{0}', space=vmem, size = 0x1000, scoped, tag = 'output window, operand 0, single buffered']
    #allocation3 [shape = 's32[1]{0}', space=sflag, size = 0x4, scoped, tag = 'scoped memory for tpu_custom_call.1']
    %12 = vsyncpa [#allocation3], 0
    // Predicated region
    $region2: #{tpu_custom_call.1} parent=1 // pred_check
      _
    $region3: #{tpu_custom_call.1} parent=1 // pred_check_branch
      %14 = sbr.rel (0) target = $region5
    $region4: #{tpu_custom_call.1} parent=1 // pred_region
      _
    $region5: #{tpu_custom_call.1} parent=1 // pred_fallthru
      _
    // Predicated region
    $region6: #{tpu_custom_call.1} parent=1 // pred_check
      _
    $region7: #{tpu_custom_call.1} parent=1 // pred_check_branch
      %16 = sbr.rel (0) target = $region9
    $region8: #{tpu_custom_call.1} parent=1 // pred_region
      _
    $region9: #{tpu_custom_call.1} parent=1 // pred_fallthru
      _
    // Predicated region
    $region10: #{tpu_custom_call.1} parent=1 // pred_check
      _
    $region11: #{tpu_custom_call.1} parent=1 // pred_check_branch
      %18 = sbr.rel (0) target = $region13
    $region12: #{tpu_custom_call.1} parent=1 // pred_region
      _
    $region13: #{tpu_custom_call.1} parent=1 // pred_fallthru
      _
    // Predicated region
    $region14: #{tpu_custom_call.1} parent=1 // pred_check
      _
    $region15: #{tpu_custom_call.1} parent=1 // pred_check_branch
      %20 = sbr.rel (0) target = $region17
    $region16: #{tpu_custom_call.1} parent=1 // pred_region
      _
    $region17: #{tpu_custom_call.1} parent=1 // pred_fallthru
      _
    // Predicated region
    $region18: #{tpu_custom_call.1} parent=1 // pred_check
      _
    $region19: #{tpu_custom_call.1} parent=1 // pred_check_branch
      %22 = sbr.rel (0) target = $region21
    $region20: #{tpu_custom_call.1} parent=1 // pred_region
      _
    $region21: #{tpu_custom_call.1} parent=1 // pred_fallthru
      _
    // Predicated region
    $region22: #{tpu_custom_call.1} parent=1 // pred_check
      _
    $region23: #{tpu_custom_call.1} parent=1 // pred_check_branch
      %24 = sbr.rel (0) target = $region25
    $region24: #{tpu_custom_call.1} parent=1 // pred_region
      _
    $region25: #{tpu_custom_call.1} parent=1 // pred_fallthru
      _
    // Predicated region
    $region26: #{tpu_custom_call.1} parent=1 // pred_check
      _
    $region27: #{tpu_custom_call.1} parent=1 // pred_check_branch
      %26 = sbr.rel (0) target = $region29
    $region28: #{tpu_custom_call.1} parent=1 // pred_region
      _
    $region29: #{tpu_custom_call.1} parent=1 // pred_fallthru
      _
    %v27 = vld [vmem:[%s4] sm:$0xff]
    %v28 = vld [vmem:[%s5] sm:$0x1]
    %29 = vset.pattern.permute.xlu0 0
    %30 = vperm.xlu0 %29, %v27
    %v31 = vpop.permute.xlu0 %30
    %v32 = vlaneseq
    %v33 = vshrl.u32 %v32, 7
    %v34 = vsub.s32 0, %v33
    %v35 = vrot.slane %v28, %v34
    %vm36 = vcmp.eq.s32.totalorder %v31, %v35
    %v37 = vld [vmem:[%s6] sm:$0x1]
    %v39 = vlaneseq
    %v40 = vshrl.u32 %v39, 7
    %v41 = vsub.s32 0, %v40
    %v42 = vrot.slane %v37, %v41
    %v44 = vsel %vm36, %v42, -18.420681
    %v45 = vld [vmem:[%s0] sm:$0xff]
    %v46 = vld [vmem:[%s2] sm:$0xff]
    %v47 = vld [vmem:[%s2 + $0x8] sm:$0xff]
    %v48 = vld [vmem:[%s2 + $0x10] sm:$0xff]
    %v49 = vld [vmem:[%s2 + $0x18] sm:$0xff]
    %v50 = vld [vmem:[%s2 + $0x20] sm:$0xff]
    %v51 = vld [vmem:[%s2 + $0x28] sm:$0xff]
    %v52 = vld [vmem:[%s2 + $0x30] sm:$0xff]
    %v53 = vld [vmem:[%s2 + $0x38] sm:$0xff]
    %v54 = vld [vmem:[%s2 + $0x40] sm:$0xff]
    %v55 = vld [vmem:[%s2 + $0x48] sm:$0xff]
    %v56 = vld [vmem:[%s2 + $0x50] sm:$0xff]
    %v57 = vld [vmem:[%s2 + $0x58] sm:$0xff]
    %v58 = vld [vmem:[%s2 + $0x60] sm:$0xff]
    %v59 = vld [vmem:[%s2 + $0x68] sm:$0xff]
    %v60 = vld [vmem:[%s2 + $0x70] sm:$0xff]
    %v61 = vld [vmem:[%s2 + $0x78] sm:$0xff]
    %62 = vmatprep.subr.mxu0 0.0
    %63 = vmatpush1.msra.mxu0 %v46
    %64 = vmatprep.subr.mxu0 0.0
    %65 = vmatpush1.msra.mxu0 %v47
    %66 = vmatprep.subr.mxu0 0.0
    %67 = vmatpush1.msra.mxu0 %v48
    %68 = vmatprep.subr.mxu0 0.0
    %69 = vmatpush1.msra.mxu0 %v49
    %70 = vmatprep.subr.mxu0 0.0
    %71 = vmatpush1.msra.mxu0 %v50
    %72 = vmatprep.subr.mxu0 0.0
    %73 = vmatpush1.msra.mxu0 %v51
    %74 = vmatprep.subr.mxu0 0.0
    %75 = vmatpush1.msra.mxu0 %v52
    %76 = vmatprep.subr.mxu0 0.0
    %77 = vmatpush1.msra.mxu0 %v53
    %78 = vmatprep.subr.mxu0 0.0
    %79 = vmatpush1.msra.mxu0 %v54
    %80 = vmatprep.subr.mxu0 0.0
    %81 = vmatpush1.msra.mxu0 %v55
    %82 = vmatprep.subr.mxu0 0.0
    %83 = vmatpush1.msra.mxu0 %v56
    %84 = vmatprep.subr.mxu0 0.0
    %85 = vmatpush1.msra.mxu0 %v57
    %86 = vmatprep.subr.mxu0 0.0
    %87 = vmatpush1.msra.mxu0 %v58
    %88 = vmatprep.subr.mxu0 0.0
    %89 = vmatpush1.msra.mxu0 %v59
    %90 = vmatprep.subr.mxu0 0.0
    %91 = vmatpush1.msra.mxu0 %v60
    %92 = vmatprep.subr.mxu0 0.0
    %93 = vmatpush1.msra.mxu0 %v61
    %94 = vmatprep.subr.mxu0 0.0
    %95 = vmatpush1.msra.mxu0 0.0
    %96 = vmatprep.subr.mxu0 0.0
    %97 = vmatpush1.msra.mxu0 0.0
    %98 = vmatprep.subr.mxu0 0.0
    %99 = vmatpush1.msra.mxu0 0.0
    %100 = vmatprep.subr.mxu0 0.0
    %101 = vmatpush1.msra.mxu0 0.0
    %102 = vmatprep.subr.mxu0 0.0
    %103 = vmatpush1.msra.mxu0 0.0
    %104 = vmatprep.subr.mxu0 0.0
    %105 = vmatpush1.msra.mxu0 0.0
    %106 = vmatprep.subr.mxu0 0.0
    %107 = vmatpush1.msra.mxu0 0.0
    %108 = vmatprep.subr.mxu0 0.0
    %109 = vmatpush1.msra.mxu0 0.0
    %110 = vmatprep.subr.mxu0 0.0
    %111 = vmatpush1.msra.mxu0 0.0
    %112 = vmatprep.subr.mxu0 0.0
    %113 = vmatpush1.msra.mxu0 0.0
    %114 = vmatprep.subr.mxu0 0.0
    %115 = vmatpush1.msra.mxu0 0.0
    %116 = vmatprep.subr.mxu0 0.0
    %117 = vmatpush1.msra.mxu0 0.0
    %118 = vmatprep.subr.mxu0 0.0
    %119 = vmatpush1.msra.mxu0 0.0
    %120 = vmatprep.subr.mxu0 0.0
    %121 = vmatpush1.msra.mxu0 0.0
    %122 = vmatprep.subr.mxu0 0.0
    %123 = vmatpush1.msra.mxu0 0.0
    %124 = vmatprep.subr.mxu0 0.0
    %125 = vmatpush1.msra.mxu0 0.0
    %126 = vmatprep.mubr.f32.mxu0 0.0
    %127 = vmatmul.mubr.f32.gmra.mrb[0].mxu0 %v45
    %v128 = vpop.f32.mrb[0].mxu0
    %v129 = vadd.f32 0.0, %v128
    %v130 = vpop.f32.mrb[0].mxu0
    %131 = vdwg.mxu0
    %v132 = vld [vmem:[%s1] sm:$0xff]
    %v133 = vld [vmem:[%s3] sm:$0xff]
    %v134 = vld [vmem:[%s3 + $0x8] sm:$0xff]
    %v135 = vld [vmem:[%s3 + $0x10] sm:$0xff]
    %v136 = vld [vmem:[%s3 + $0x18] sm:$0xff]
    %v137 = vld [vmem:[%s3 + $0x20] sm:$0xff]
    %v138 = vld [vmem:[%s3 + $0x28] sm:$0xff]
    %v139 = vld [vmem:[%s3 + $0x30] sm:$0xff]
    %v140 = vld [vmem:[%s3 + $0x38] sm:$0xff]
    %v141 = vld [vmem:[%s3 + $0x40] sm:$0xff]
    %v142 = vld [vmem:[%s3 + $0x48] sm:$0xff]
    %v143 = vld [vmem:[%s3 + $0x50] sm:$0xff]
    %v144 = vld [vmem:[%s3 + $0x58] sm:$0xff]
    %v145 = vld [vmem:[%s3 + $0x60] sm:$0xff]
    %v146 = vld [vmem:[%s3 + $0x68] sm:$0xff]
    %v147 = vld [vmem:[%s3 + $0x70] sm:$0xff]
    %v148 = vld [vmem:[%s3 + $0x78] sm:$0xff]
    %149 = vmatprep.subr.mxu0 0.0
    %150 = vmatpush1.msra.mxu0 %v133
    %151 = vmatprep.subr.mxu0 0.0
    %152 = vmatpush1.msra.mxu0 %v134
    %153 = vmatprep.subr.mxu0 0.0
    %154 = vmatpush1.msra.mxu0 %v135
    %155 = vmatprep.subr.mxu0 0.0
    %156 = vmatpush1.msra.mxu0 %v136
    %157 = vmatprep.subr.mxu0 0.0
    %158 = vmatpush1.msra.mxu0 %v137
    %159 = vmatprep.subr.mxu0 0.0
    %160 = vmatpush1.msra.mxu0 %v138
    %161 = vmatprep.subr.mxu0 0.0
    %162 = vmatpush1.msra.mxu0 %v139
    %163 = vmatprep.subr.mxu0 0.0
    %164 = vmatpush1.msra.mxu0 %v140
    %165 = vmatprep.subr.mxu0 0.0
    %166 = vmatpush1.msra.mxu0 %v141
    %167 = vmatprep.subr.mxu0 0.0
    %168 = vmatpush1.msra.mxu0 %v142
    %169 = vmatprep.subr.mxu0 0.0
    %170 = vmatpush1.msra.mxu0 %v143
    %171 = vmatprep.subr.mxu0 0.0
    %172 = vmatpush1.msra.mxu0 %v144
    %173 = vmatprep.subr.mxu0 0.0
    %174 = vmatpush1.msra.mxu0 %v145
    %175 = vmatprep.subr.mxu0 0.0
    %176 = vmatpush1.msra.mxu0 %v146
    %177 = vmatprep.subr.mxu0 0.0
    %178 = vmatpush1.msra.mxu0 %v147
    %179 = vmatprep.subr.mxu0 0.0
    %180 = vmatpush1.msra.mxu0 %v148
    %181 = vmatprep.subr.mxu0 0.0
    %182 = vmatpush1.msra.mxu0 0.0
    %183 = vmatprep.subr.mxu0 0.0
    %184 = vmatpush1.msra.mxu0 0.0
    %185 = vmatprep.subr.mxu0 0.0
    %186 = vmatpush1.msra.mxu0 0.0
    %187 = vmatprep.subr.mxu0 0.0
    %188 = vmatpush1.msra.mxu0 0.0
    %189 = vmatprep.subr.mxu0 0.0
    %190 = vmatpush1.msra.mxu0 0.0
    %191 = vmatprep.subr.mxu0 0.0
    %192 = vmatpush1.msra.mxu0 0.0
    %193 = vmatprep.subr.mxu0 0.0
    %194 = vmatpush1.msra.mxu0 0.0
    %195 = vmatprep.subr.mxu0 0.0
    %196 = vmatpush1.msra.mxu0 0.0
    %197 = vmatprep.subr.mxu0 0.0
    %198 = vmatpush1.msra.mxu0 0.0
    %199 = vmatprep.subr.mxu0 0.0
    %200 = vmatpush1.msra.mxu0 0.0
    %201 = vmatprep.subr.mxu0 0.0
    %202 = vmatpush1.msra.mxu0 0.0
    %203 = vmatprep.subr.mxu0 0.0
    %204 = vmatpush1.msra.mxu0 0.0
    %205 = vmatprep.subr.mxu0 0.0
    %206 = vmatpush1.msra.mxu0 0.0
    %207 = vmatprep.subr.mxu0 0.0
    %208 = vmatpush1.msra.mxu0 0.0
    %209 = vmatprep.subr.mxu0 0.0
    %210 = vmatpush1.msra.mxu0 0.0
    %211 = vmatprep.subr.mxu0 0.0
    %212 = vmatpush1.msra.mxu0 0.0
    %213 = vmatprep.mubr.f32.mxu0 0.0
    %214 = vmatmul.mubr.f32.gmra.mrb[0].mxu0 %v132
    %v215 = vpop.f32.mrb[0].mxu0
    %v216 = vadd.f32 0.0, %v215
    %v217 = vpop.f32.mrb[0].mxu0
    %218 = vdwg.mxu0
    %v219 = vmul.f32 %v129, %v129
    %v220 = vsub.f32 1.0, %v219
    %v221 = vmax.f32 %v220, 0.0
    %v222 = vrsqrt.pop %v221
    %v223 = vmul.f32 %v221, %v222
    %vm224 = vcmp.eq.f32.partialorder %v221, inf
    %v225 = vsel %vm224, %v221, %v223
    %vm226 = vcmp.eq.f32.partialorder %v221, 0.0
    %v227 = vand.u32 %v221, 2147483648
    %v228 = vsel %vm226, %v227, %v225
    %vm229 = vcmp.gt.f32.partialorder %v129, -0.9800666
    %v230 = vmul.f32 %v129, 0.9800666
    %v231 = vmul.f32 %v228, 0.19866933
    %v232 = vsub.f32 %v230, %v231
    %v233 = vsub.f32 %v129, 0.039733864
    %v234 = vsel %vm229, %v232, %v233
    %v235 = vmul.f32 %v129, 50.0
    %v236 = vmul.f32 %v235, 1.442695
    %v237 = vpow.pop %v236
    %vm238 = vcmask 64512
    %v239 = vsel %vm238, %v237, 0.0
    %240 = vadd.xlane.f32.xlu0 %v239
    %v241 = vpop.xlane.xlu0 %240
    %v242 = vsub.f32 %v241, %v237
    %v243 = vmul.f32 %v234, 50.0
    %v244 = vmul.f32 %v243, 1.442695
    %v245 = vpow.pop %v244
    %v246 = vadd.f32 %v245, %v242
    %v247 = vlog2.pop %v246
    %v248 = vmul.f32 %v247, 0.6931472
    %v249 = vsub.f32 %v243, %v248
    %v250 = vrcp.pop %v246
    %v251 = vmul.f32 %v245, %v250
    %v252 = vsel %vm238, %v251, 0.0
    %253 = vadd.xlane.f32.xlu0 %v252
    %v254 = vpop.xlane.xlu0 %253
    %v255 = vsub.f32 %v249, %v44
    %v256 = vmul.f32 %v251, %v255
    %v257 = vsel %vm238, %v256, 0.0
    %258 = vadd.xlane.f32.xlu0 %v257
    %v259 = vpop.xlane.xlu0 %258
    %v260 = vrcp.pop %v254
    %v261 = vmul.f32 %v259, %v260
    %v262 = vlog2.pop %v254
    %v263 = vmul.f32 %v262, 0.6931472
    %v264 = vsub.f32 %v261, %v263
    %vm265 = vcmask 7168
    %v266 = vsel %vm265, %v264, 0.0
    %267 = vadd.xlane.f32.xlu0 %v266
    %v268 = vpop.xlane.xlu0 %267
    %v269 = vrot.slane %v268, 4
    %v270 = vadd.f32 %v268, %v269
    %v271 = vrot.slane %v270, 2
    %v272 = vadd.f32 %v270, %v271
    %v273 = vrot.slane %v272, 1
    %v274 = vadd.f32 %v272, %v273
    %s275 = vtos %v274
    %v276 = vmul.f32 %v216, %v216
    %v277 = vsub.f32 1.0, %v276
    %v278 = vmax.f32 %v277, 0.0
    %v279 = vrsqrt.pop %v278
    %v280 = vmul.f32 %v278, %v279
    %vm281 = vcmp.eq.f32.partialorder %v278, inf
    %v282 = vsel %vm281, %v278, %v280
    %vm283 = vcmp.eq.f32.partialorder %v278, 0.0
    %v284 = vand.u32 %v278, 2147483648
    %v285 = vsel %vm283, %v284, %v282
    %vm286 = vcmp.gt.f32.partialorder %v216, -0.9800666
    %v287 = vmul.f32 %v216, 0.9800666
    %v288 = vmul.f32 %v285, 0.19866933
    %v289 = vsub.f32 %v287, %v288
    %v290 = vsub.f32 %v216, 0.039733864
    %v291 = vsel %vm286, %v289, %v290
    %v292 = vmul.f32 %v216, 50.0
    %v293 = vmul.f32 %v292, 1.442695
    %v294 = vpow.pop %v293
    %v295 = vsel %vm238, %v294, 0.0
    %296 = vadd.xlane.f32.xlu0 %v295
    %v297 = vpop.xlane.xlu0 %296
    %v298 = vsub.f32 %v297, %v294
    %v299 = vmul.f32 %v291, 50.0
    %v300 = vmul.f32 %v299, 1.442695
    %v301 = vpow.pop %v300
    %v302 = vadd.f32 %v301, %v298
    %v303 = vlog2.pop %v302
    %v304 = vmul.f32 %v303, 0.6931472
    %v305 = vsub.f32 %v299, %v304
    %v306 = vrcp.pop %v302
    %v307 = vmul.f32 %v301, %v306
    %v308 = vsel %vm238, %v307, 0.0
    %309 = vadd.xlane.f32.xlu0 %v308
    %v310 = vpop.xlane.xlu0 %309
    %v311 = vsub.f32 %v305, %v44
    %v312 = vmul.f32 %v307, %v311
    %v313 = vsel %vm238, %v312, 0.0
    %314 = vadd.xlane.f32.xlu0 %v313
    %v315 = vpop.xlane.xlu0 %314
    %v316 = vrcp.pop %v310
    %v317 = vmul.f32 %v315, %v316
    %v318 = vlog2.pop %v310
    %v319 = vmul.f32 %v318, 0.6931472
    %v320 = vsub.f32 %v317, %v319
    %v321 = vsel %vm265, %v320, 0.0
    %322 = vadd.xlane.f32.xlu0 %v321
    %v323 = vpop.xlane.xlu0 %322
    %v324 = vrot.slane %v323, 4
    %v325 = vadd.f32 %v323, %v324
    %v326 = vrot.slane %v325, 2
    %v327 = vadd.f32 %v325, %v326
    %v328 = vrot.slane %v327, 1
    %v329 = vadd.f32 %v327, %v328
    %s330 = vtos %v329
    %s331 = sadd.f32 %s275, %s330
    %v332 = vstv %s331
    %333 = vst [vmem:[#allocation2] sm:$0xff] %v332
    // Predicated region
    $region30: #{tpu_custom_call.1} parent=1 // pred_check
      _
    $region31: #{tpu_custom_call.1} parent=1 // pred_check_branch
      %335 = sbr.rel (0) target = $region33
    $region32: #{tpu_custom_call.1} parent=1 // pred_region
      %s337 = ssub.s32 128, 128
      %338 = vsyncadd [#allocation3], %s337
      %s340 = sshll.u32 [#allocation2], 4
      %s341 = int_to_ptr.vmem [resolvable:$true] %s340
      %343 = dma.vmem_to_hbm [thread:$0]  %s341, 128, %s7, [#allocation3]
    $region33: #{tpu_custom_call.1} parent=1 // pred_fallthru
      _
    // Predicated region
    $region34: #{tpu_custom_call.1} parent=1 // pred_check
      _
    $region35: #{tpu_custom_call.1} parent=1 // pred_check_branch
      %345 = sbr.rel (0) target = $region37
    $region36: #{tpu_custom_call.1} parent=1 // pred_region
      %346 = dma.done [#allocation3], 128
    $region37: #{tpu_custom_call.1} parent=1 // pred_fallthru
      _
    %347 = vsyncpa [#allocation3], 1

// kernel: tpu_custom_call.1
$region0: #{tpu_custom_call.1}
  #allocation0 [shape = 'u32[]', space=smem, size = 0x4, offset = 0x4, fixed_abs, tag = 'smem constant byte address 0x4 - core index']
  #allocation1 [shape = 'u32[144,128]{1,0:T(1,128)}', space=vmem, size = 0x12000, scoped, tag = 'internal scratch']
  %s0 = inlined_call_operand.vmem [shape: f32[8,128], index: 0, kind: input, shape index: {}]
  %s1 = inlined_call_operand.vmem [shape: f32[8,128], index: 1, kind: input, shape index: {}]
  %s2 = inlined_call_operand.vmem [shape: f32[128,8], index: 2, kind: input, shape index: {}]
  %s3 = inlined_call_operand.vmem [shape: f32[128,8], index: 3, kind: input, shape index: {}]
  %s4 = inlined_call_operand.vmem [shape: s32[8,1], index: 4, kind: input, shape index: {}]
  %s5 = inlined_call_operand.vmem [shape: s32[1,8], index: 5, kind: input, shape index: {}]
  %s6 = inlined_call_operand.vmem [shape: f32[1,8], index: 6, kind: input, shape index: {}]
  %s7 = inlined_call_operand.hbm [shape: f32[1,8,128], index: 7, kind: output, shape index: {}]
  %s8 = sld [smem:[#allocation0]]
  $region38: #{tpu_custom_call.1} parent=0
    _
  %s10 = ssub.s32 1, %s8
  %s11 = scalar_select 0, %s10, %s8
  $region1: #{tpu_custom_call.1} parent=0
    #allocation2 [shape = 'u8[4096]{0}', space=vmem, size = 0x1000, scoped, tag = 'output window, operand 0, single buffered']
    #allocation3 [shape = 's32[1]{0}', space=sflag, size = 0x4, scoped, tag = 'scoped memory for tpu_custom_call.1']
    %12 = vsyncpa [#allocation3], 0
    // Predicated region
    $region2: #{tpu_custom_call.1} parent=1 // pred_check
      _
    $region3: #{tpu_custom_call.1} parent=1 // pred_check_branch
      %14 = sbr.rel (0) target = $region5
    $region4: #{tpu_custom_call.1} parent=1 // pred_region
      _
    $region5: #{tpu_custom_call.1} parent=1 // pred_fallthru
      _
    // Predicated region
    $region6: #{tpu_custom_call.1} parent=1 // pred_check
      _
    $region7: #{tpu_custom_call.1} parent=1 // pred_check_branch
      %16 = sbr.rel (0) target = $region9
    $region8: #{tpu_custom_call.1} parent=1 // pred_region
      _
    $region9: #{tpu_custom_call.1} parent=1 // pred_fallthru
      _
    // Predicated region
    $region10: #{tpu_custom_call.1} parent=1 // pred_check
      _
    $region11: #{tpu_custom_call.1} parent=1 // pred_check_branch
      %18 = sbr.rel (0) target = $region13
    $region12: #{tpu_custom_call.1} parent=1 // pred_region
      _
    $region13: #{tpu_custom_call.1} parent=1 // pred_fallthru
      _
    // Predicated region
    $region14: #{tpu_custom_call.1} parent=1 // pred_check
      _
    $region15: #{tpu_custom_call.1} parent=1 // pred_check_branch
      %20 = sbr.rel (0) target = $region17
    $region16: #{tpu_custom_call.1} parent=1 // pred_region
      _
    $region17: #{tpu_custom_call.1} parent=1 // pred_fallthru
      _
    // Predicated region
    $region18: #{tpu_custom_call.1} parent=1 // pred_check
      _
    $region19: #{tpu_custom_call.1} parent=1 // pred_check_branch
      %22 = sbr.rel (0) target = $region21
    $region20: #{tpu_custom_call.1} parent=1 // pred_region
      _
    $region21: #{tpu_custom_call.1} parent=1 // pred_fallthru
      _
    // Predicated region
    $region22: #{tpu_custom_call.1} parent=1 // pred_check
      _
    $region23: #{tpu_custom_call.1} parent=1 // pred_check_branch
      %24 = sbr.rel (0) target = $region25
    $region24: #{tpu_custom_call.1} parent=1 // pred_region
      _
    $region25: #{tpu_custom_call.1} parent=1 // pred_fallthru
      _
    // Predicated region
    $region26: #{tpu_custom_call.1} parent=1 // pred_check
      _
    $region27: #{tpu_custom_call.1} parent=1 // pred_check_branch
      %26 = sbr.rel (0) target = $region29
    $region28: #{tpu_custom_call.1} parent=1 // pred_region
      _
    $region29: #{tpu_custom_call.1} parent=1 // pred_fallthru
      _
    %v27 = vld [vmem:[%s4] sm:$0xff]
    %v28 = vld [vmem:[%s5] sm:$0x1]
    %29 = vset.pattern.permute.xlu0 0
    %30 = vperm.xlu0 %29, %v27
    %v31 = vpop.permute.xlu0 %30
    %v32 = vlaneseq
    %v33 = vshrl.u32 %v32, 7
    %v34 = vsub.s32 0, %v33
    %v35 = vrot.slane %v28, %v34
    %vm36 = vcmp.eq.s32.totalorder %v31, %v35
    %v37 = vld [vmem:[%s6] sm:$0x1]
    %v39 = vlaneseq
    %v40 = vshrl.u32 %v39, 7
    %v41 = vsub.s32 0, %v40
    %v42 = vrot.slane %v37, %v41
    %v44 = vsel %vm36, %v42, -18.420681
    %v45 = vld [vmem:[%s0] sm:$0xff]
    %v46 = vld [vmem:[%s2] sm:$0xff]
    %v47 = vld [vmem:[%s2 + $0x8] sm:$0xff]
    %v48 = vld [vmem:[%s2 + $0x10] sm:$0xff]
    %v49 = vld [vmem:[%s2 + $0x18] sm:$0xff]
    %v50 = vld [vmem:[%s2 + $0x20] sm:$0xff]
    %v51 = vld [vmem:[%s2 + $0x28] sm:$0xff]
    %v52 = vld [vmem:[%s2 + $0x30] sm:$0xff]
    %v53 = vld [vmem:[%s2 + $0x38] sm:$0xff]
    %v54 = vld [vmem:[%s2 + $0x40] sm:$0xff]
    %v55 = vld [vmem:[%s2 + $0x48] sm:$0xff]
    %v56 = vld [vmem:[%s2 + $0x50] sm:$0xff]
    %v57 = vld [vmem:[%s2 + $0x58] sm:$0xff]
    %v58 = vld [vmem:[%s2 + $0x60] sm:$0xff]
    %v59 = vld [vmem:[%s2 + $0x68] sm:$0xff]
    %v60 = vld [vmem:[%s2 + $0x70] sm:$0xff]
    %v61 = vld [vmem:[%s2 + $0x78] sm:$0xff]
    %62 = vmatprep.subr.mxu0 0.0
    %63 = vmatpush1.msra.mxu0 %v46
    %64 = vmatprep.subr.mxu0 0.0
    %65 = vmatpush1.msra.mxu0 %v47
    %66 = vmatprep.subr.mxu0 0.0
    %67 = vmatpush1.msra.mxu0 %v48
    %68 = vmatprep.subr.mxu0 0.0
    %69 = vmatpush1.msra.mxu0 %v49
    %70 = vmatprep.subr.mxu0 0.0
    %71 = vmatpush1.msra.mxu0 %v50
    %72 = vmatprep.subr.mxu0 0.0
    %73 = vmatpush1.msra.mxu0 %v51
    %74 = vmatprep.subr.mxu0 0.0
    %75 = vmatpush1.msra.mxu0 %v52
    %76 = vmatprep.subr.mxu0 0.0
    %77 = vmatpush1.msra.mxu0 %v53
    %78 = vmatprep.subr.mxu0 0.0
    %79 = vmatpush1.msra.mxu0 %v54
    %80 = vmatprep.subr.mxu0 0.0
    %81 = vmatpush1.msra.mxu0 %v55
    %82 = vmatprep.subr.mxu0 0.0
    %83 = vmatpush1.msra.mxu0 %v56
    %84 = vmatprep.subr.mxu0 0.0
    %85 = vmatpush1.msra.mxu0 %v57
    %86 = vmatprep.subr.mxu0 0.0
    %87 = vmatpush1.msra.mxu0 %v58
    %88 = vmatprep.subr.mxu0 0.0
    %89 = vmatpush1.msra.mxu0 %v59
    %90 = vmatprep.subr.mxu0 0.0
    %91 = vmatpush1.msra.mxu0 %v60
    %92 = vmatprep.subr.mxu0 0.0
    %93 = vmatpush1.msra.mxu0 %v61
    %94 = vmatprep.subr.mxu0 0.0
    %95 = vmatpush1.msra.mxu0 0.0
    %96 = vmatprep.subr.mxu0 0.0
    %97 = vmatpush1.msra.mxu0 0.0
    %98 = vmatprep.subr.mxu0 0.0
    %99 = vmatpush1.msra.mxu0 0.0
    %100 = vmatprep.subr.mxu0 0.0
    %101 = vmatpush1.msra.mxu0 0.0
    %102 = vmatprep.subr.mxu0 0.0
    %103 = vmatpush1.msra.mxu0 0.0
    %104 = vmatprep.subr.mxu0 0.0
    %105 = vmatpush1.msra.mxu0 0.0
    %106 = vmatprep.subr.mxu0 0.0
    %107 = vmatpush1.msra.mxu0 0.0
    %108 = vmatprep.subr.mxu0 0.0
    %109 = vmatpush1.msra.mxu0 0.0
    %110 = vmatprep.subr.mxu0 0.0
    %111 = vmatpush1.msra.mxu0 0.0
    %112 = vmatprep.subr.mxu0 0.0
    %113 = vmatpush1.msra.mxu0 0.0
    %114 = vmatprep.subr.mxu0 0.0
    %115 = vmatpush1.msra.mxu0 0.0
    %116 = vmatprep.subr.mxu0 0.0
    %117 = vmatpush1.msra.mxu0 0.0
    %118 = vmatprep.subr.mxu0 0.0
    %119 = vmatpush1.msra.mxu0 0.0
    %120 = vmatprep.subr.mxu0 0.0
    %121 = vmatpush1.msra.mxu0 0.0
    %122 = vmatprep.subr.mxu0 0.0
    %123 = vmatpush1.msra.mxu0 0.0
    %124 = vmatprep.subr.mxu0 0.0
    %125 = vmatpush1.msra.mxu0 0.0
    %126 = vmatprep.mubr.f32.mxu0 0.0
    %127 = vmatmul.mubr.f32.gmra.mrb[0].mxu0 %v45
    %v128 = vpop.f32.mrb[0].mxu0
    %v129 = vadd.f32 0.0, %v128
    %v130 = vpop.f32.mrb[0].mxu0
    %131 = vdwg.mxu0
    %v132 = vld [vmem:[%s1] sm:$0xff]
    %v133 = vld [vmem:[%s3] sm:$0xff]
    %v134 = vld [vmem:[%s3 + $0x8] sm:$0xff]
    %v135 = vld [vmem:[%s3 + $0x10] sm:$0xff]
    %v136 = vld [vmem:[%s3 + $0x18] sm:$0xff]
    %v137 = vld [vmem:[%s3 + $0x20] sm:$0xff]
    %v138 = vld [vmem:[%s3 + $0x28] sm:$0xff]
    %v139 = vld [vmem:[%s3 + $0x30] sm:$0xff]
    %v140 = vld [vmem:[%s3 + $0x38] sm:$0xff]
    %v141 = vld [vmem:[%s3 + $0x40] sm:$0xff]
    %v142 = vld [vmem:[%s3 + $0x48] sm:$0xff]
    %v143 = vld [vmem:[%s3 + $0x50] sm:$0xff]
    %v144 = vld [vmem:[%s3 + $0x58] sm:$0xff]
    %v145 = vld [vmem:[%s3 + $0x60] sm:$0xff]
    %v146 = vld [vmem:[%s3 + $0x68] sm:$0xff]
    %v147 = vld [vmem:[%s3 + $0x70] sm:$0xff]
    %v148 = vld [vmem:[%s3 + $0x78] sm:$0xff]
    %149 = vmatprep.subr.mxu0 0.0
    %150 = vmatpush1.msra.mxu0 %v133
    %151 = vmatprep.subr.mxu0 0.0
    %152 = vmatpush1.msra.mxu0 %v134
    %153 = vmatprep.subr.mxu0 0.0
    %154 = vmatpush1.msra.mxu0 %v135
    %155 = vmatprep.subr.mxu0 0.0
    %156 = vmatpush1.msra.mxu0 %v136
    %157 = vmatprep.subr.mxu0 0.0
    %158 = vmatpush1.msra.mxu0 %v137
    %159 = vmatprep.subr.mxu0 0.0
    %160 = vmatpush1.msra.mxu0 %v138
    %161 = vmatprep.subr.mxu0 0.0
    %162 = vmatpush1.msra.mxu0 %v139
    %163 = vmatprep.subr.mxu0 0.0
    %164 = vmatpush1.msra.mxu0 %v140
    %165 = vmatprep.subr.mxu0 0.0
    %166 = vmatpush1.msra.mxu0 %v141
    %167 = vmatprep.subr.mxu0 0.0
    %168 = vmatpush1.msra.mxu0 %v142
    %169 = vmatprep.subr.mxu0 0.0
    %170 = vmatpush1.msra.mxu0 %v143
    %171 = vmatprep.subr.mxu0 0.0
    %172 = vmatpush1.msra.mxu0 %v144
    %173 = vmatprep.subr.mxu0 0.0
    %174 = vmatpush1.msra.mxu0 %v145
    %175 = vmatprep.subr.mxu0 0.0
    %176 = vmatpush1.msra.mxu0 %v146
    %177 = vmatprep.subr.mxu0 0.0
    %178 = vmatpush1.msra.mxu0 %v147
    %179 = vmatprep.subr.mxu0 0.0
    %180 = vmatpush1.msra.mxu0 %v148
    %181 = vmatprep.subr.mxu0 0.0
    %182 = vmatpush1.msra.mxu0 0.0
    %183 = vmatprep.subr.mxu0 0.0
    %184 = vmatpush1.msra.mxu0 0.0
    %185 = vmatprep.subr.mxu0 0.0
    %186 = vmatpush1.msra.mxu0 0.0
    %187 = vmatprep.subr.mxu0 0.0
    %188 = vmatpush1.msra.mxu0 0.0
    %189 = vmatprep.subr.mxu0 0.0
    %190 = vmatpush1.msra.mxu0 0.0
    %191 = vmatprep.subr.mxu0 0.0
    %192 = vmatpush1.msra.mxu0 0.0
    %193 = vmatprep.subr.mxu0 0.0
    %194 = vmatpush1.msra.mxu0 0.0
    %195 = vmatprep.subr.mxu0 0.0
    %196 = vmatpush1.msra.mxu0 0.0
    %197 = vmatprep.subr.mxu0 0.0
    %198 = vmatpush1.msra.mxu0 0.0
    %199 = vmatprep.subr.mxu0 0.0
    %200 = vmatpush1.msra.mxu0 0.0
    %201 = vmatprep.subr.mxu0 0.0
    %202 = vmatpush1.msra.mxu0 0.0
    %203 = vmatprep.subr.mxu0 0.0
    %204 = vmatpush1.msra.mxu0 0.0
    %205 = vmatprep.subr.mxu0 0.0
    %206 = vmatpush1.msra.mxu0 0.0
    %207 = vmatprep.subr.mxu0 0.0
    %208 = vmatpush1.msra.mxu0 0.0
    %209 = vmatprep.subr.mxu0 0.0
    %210 = vmatpush1.msra.mxu0 0.0
    %211 = vmatprep.subr.mxu0 0.0
    %212 = vmatpush1.msra.mxu0 0.0
    %213 = vmatprep.mubr.f32.mxu0 0.0
    %214 = vmatmul.mubr.f32.gmra.mrb[0].mxu0 %v132
    %v215 = vpop.f32.mrb[0].mxu0
    %v216 = vadd.f32 0.0, %v215
    %v217 = vpop.f32.mrb[0].mxu0
    %218 = vdwg.mxu0
    %v219 = vmul.f32 %v129, %v129
    %v220 = vsub.f32 1.0, %v219
    %v221 = vmax.f32 %v220, 0.0
    %v222 = vrsqrt.pop %v221
    %v223 = vmul.f32 %v221, %v222
    %vm224 = vcmp.eq.f32.partialorder %v221, inf
    %v225 = vsel %vm224, %v221, %v223
    %vm226 = vcmp.eq.f32.partialorder %v221, 0.0
    %v227 = vand.u32 %v221, 2147483648
    %v228 = vsel %vm226, %v227, %v225
    %vm229 = vcmp.gt.f32.partialorder %v129, -0.9800666
    %v230 = vmul.f32 %v129, 0.9800666
    %v231 = vmul.f32 %v228, 0.19866933
    %v232 = vsub.f32 %v230, %v231
    %v233 = vsub.f32 %v129, 0.039733864
    %v234 = vsel %vm229, %v232, %v233
    %v235 = vmul.f32 %v129, 50.0
    %v236 = vmul.f32 %v235, 1.442695
    %v237 = vpow.pop %v236
    %vm238 = vcmask 64512
    %v239 = vsel %vm238, %v237, 0.0
    %240 = vadd.xlane.f32.xlu0 %v239
    %v241 = vpop.xlane.xlu0 %240
    %v242 = vsub.f32 %v241, %v237
    %v243 = vmul.f32 %v234, 50.0
    %v244 = vmul.f32 %v243, 1.442695
    %v245 = vpow.pop %v244
    %v246 = vadd.f32 %v245, %v242
    %v247 = vlog2.pop %v246
    %v248 = vmul.f32 %v247, 0.6931472
    %v249 = vsub.f32 %v243, %v248
    %v250 = vrcp.pop %v246
    %v251 = vmul.f32 %v245, %v250
    %v252 = vsel %vm238, %v251, 0.0
    %253 = vadd.xlane.f32.xlu0 %v252
    %v254 = vpop.xlane.xlu0 %253
    %v255 = vsub.f32 %v249, %v44
    %v256 = vmul.f32 %v251, %v255
    %v257 = vsel %vm238, %v256, 0.0
    %258 = vadd.xlane.f32.xlu0 %v257
    %v259 = vpop.xlane.xlu0 %258
    %v260 = vrcp.pop %v254
    %v261 = vmul.f32 %v259, %v260
    %v262 = vlog2.pop %v254
    %v263 = vmul.f32 %v262, 0.6931472
    %v264 = vsub.f32 %v261, %v263
    %vm265 = vcmask 7168
    %v266 = vsel %vm265, %v264, 0.0
    %267 = vadd.xlane.f32.xlu0 %v266
    %v268 = vpop.xlane.xlu0 %267
    %v269 = vrot.slane %v268, 4
    %v270 = vadd.f32 %v268, %v269
    %v271 = vrot.slane %v270, 2
    %v272 = vadd.f32 %v270, %v271
    %v273 = vrot.slane %v272, 1
    %v274 = vadd.f32 %v272, %v273
    %s275 = vtos %v274
    %v276 = vmul.f32 %v216, %v216
    %v277 = vsub.f32 1.0, %v276
    %v278 = vmax.f32 %v277, 0.0
    %v279 = vrsqrt.pop %v278
    %v280 = vmul.f32 %v278, %v279
    %vm281 = vcmp.eq.f32.partialorder %v278, inf
    %v282 = vsel %vm281, %v278, %v280
    %vm283 = vcmp.eq.f32.partialorder %v278, 0.0
    %v284 = vand.u32 %v278, 2147483648
    %v285 = vsel %vm283, %v284, %v282
    %vm286 = vcmp.gt.f32.partialorder %v216, -0.9800666
    %v287 = vmul.f32 %v216, 0.9800666
    %v288 = vmul.f32 %v285, 0.19866933
    %v289 = vsub.f32 %v287, %v288
    %v290 = vsub.f32 %v216, 0.039733864
    %v291 = vsel %vm286, %v289, %v290
    %v292 = vmul.f32 %v216, 50.0
    %v293 = vmul.f32 %v292, 1.442695
    %v294 = vpow.pop %v293
    %v295 = vsel %vm238, %v294, 0.0
    %296 = vadd.xlane.f32.xlu0 %v295
    %v297 = vpop.xlane.xlu0 %296
    %v298 = vsub.f32 %v297, %v294
    %v299 = vmul.f32 %v291, 50.0
    %v300 = vmul.f32 %v299, 1.442695
    %v301 = vpow.pop %v300
    %v302 = vadd.f32 %v301, %v298
    %v303 = vlog2.pop %v302
    %v304 = vmul.f32 %v303, 0.6931472
    %v305 = vsub.f32 %v299, %v304
    %v306 = vrcp.pop %v302
    %v307 = vmul.f32 %v301, %v306
    %v308 = vsel %vm238, %v307, 0.0
    %309 = vadd.xlane.f32.xlu0 %v308
    %v310 = vpop.xlane.xlu0 %309
    %v311 = vsub.f32 %v305, %v44
    %v312 = vmul.f32 %v307, %v311
    %v313 = vsel %vm238, %v312, 0.0
    %314 = vadd.xlane.f32.xlu0 %v313
    %v315 = vpop.xlane.xlu0 %314
    %v316 = vrcp.pop %v310
    %v317 = vmul.f32 %v315, %v316
    %v318 = vlog2.pop %v310
    %v319 = vmul.f32 %v318, 0.6931472
    %v320 = vsub.f32 %v317, %v319
    %v321 = vsel %vm265, %v320, 0.0
    %322 = vadd.xlane.f32.xlu0 %v321
    %v323 = vpop.xlane.xlu0 %322
    %v324 = vrot.slane %v323, 4
    %v325 = vadd.f32 %v323, %v324
    %v326 = vrot.slane %v325, 2
    %v327 = vadd.f32 %v325, %v326
    %v328 = vrot.slane %v327, 1
    %v329 = vadd.f32 %v327, %v328
    %s330 = vtos %v329
    %s331 = sadd.f32 %s275, %s330
    %v332 = vstv %s331
    %333 = vst [vmem:[#allocation2] sm:$0xff] %v332
    // Predicated region
    $region30: #{tpu_custom_call.1} parent=1 // pred_check
      _
    $region31: #{tpu_custom_call.1} parent=1 // pred_check_branch
      %335 = sbr.rel (0) target = $region33
    $region32: #{tpu_custom_call.1} parent=1 // pred_region
      %s337 = ssub.s32 128, 128
      %338 = vsyncadd [#allocation3], %s337
      %s340 = sshll.u32 [#allocation2], 4
      %s341 = int_to_ptr.vmem [resolvable:$true] %s340
      %343 = dma.vmem_to_hbm [thread:$0]  %s341, 128, %s7, [#allocation3]
    $region33: #{tpu_custom_call.1} parent=1 // pred_fallthru
      _
    // Predicated region
    $region34: #{tpu_custom_call.1} parent=1 // pred_check
      _
    $region35: #{tpu_custom_call.1} parent=1 // pred_check_branch
      %345 = sbr.rel (0) target = $region37
    $region36: #{tpu_custom_call.1} parent=1 // pred_region
      %346 = dma.done [#allocation3], 128
    $region37: #{tpu_custom_call.1} parent=1 // pred_fallthru
      _
    %347 = vsyncpa [#allocation3], 1

</llo_original>
